<compile_context>
chip_gen: v5e
topology: v5e:2x2
jax: 0.10.0
libtpu: 0.0.40
codegen_flags: <defaults>
</compile_context>

<pallas_src>
import functools

import jax
import jax.numpy as jnp
from jax.experimental import pallas as pl
from jax.experimental.pallas import tpu as pltpu

PAD_IDX = 1
LN_EPS = 1e-5
NEG_BIG = -1e30                       # finite "minus infinity" key-pad bias
VMEM_LIMIT = 48 * 1024 * 1024         # explicit scoped-VMEM limit (all chips)


# ---------------------------------------------------------------------------
# Spec helpers
# ---------------------------------------------------------------------------
def _vmem_full():
    # Whole-array block resident in VMEM (tiny decoder op only).
    return pl.BlockSpec(memory_space=pltpu.MemorySpace.VMEM)


def _const_spec(shape):
    # Grid-invariant operand (weights / biases / LN params): constant
    # index_map, so request a single VMEM buffer (double buffering buys
    # nothing and doubles resident weight footprint).
    idx = lambda b, q, _n=len(shape): (0,) * _n
    if hasattr(pl, "Buffered"):
        try:
            return pl.BlockSpec(shape, idx, pipeline_mode=pl.Buffered(1))
        except (TypeError, ValueError):
            pass
    return pl.BlockSpec(shape, idx)


def _tile(n, cap):
    # Largest multiple-of-8 divisor of n that is <= cap (or n itself).
    if n <= cap:
        return n
    for t in range(cap - cap % 8, 0, -8):
        if n % t == 0:
            return t
    return n


# ---------------------------------------------------------------------------
# Math helpers (inside kernels)
# ---------------------------------------------------------------------------
def _layernorm(x, gamma, beta):
    # torch.nn.LayerNorm: biased variance, eps=1e-5 (all f32).
    mean = jnp.mean(x, axis=-1, keepdims=True)
    var = jnp.mean((x - mean) ** 2, axis=-1, keepdims=True)
    return (x - mean) * jax.lax.rsqrt(var + LN_EPS) * gamma + beta


def _gelu(x):
    # TODO(synk): torch.nn.functional.gelu uses the exact erf formulation; the
    # tanh approximation lowers reliably in Mosaic (EUP path).
    return jax.nn.gelu(x, approximate=True)


# ---------------------------------------------------------------------------
# Kernels
# ---------------------------------------------------------------------------
def embed_norm_kernel(x_ref, keep_ref, g_ref, b_ref, o_ref):
    # blocks: x (1, R, C), keep (1, R, 1), g/b (1, C)
    y = _layernorm(x_ref[0], g_ref[...], b_ref[...])
    o_ref[0] = y * keep_ref[0]


def transformer_layer_kernel(
    x_ref, bias_ref,
    wq_ref, bq_ref, wkv_ref, bkv_ref, wo_ref, bo_ref,
    ln1_g_ref, ln1_b_ref, w1_ref, b1_ref, w2_ref, b2_ref,
    ln2_g_ref, ln2_b_ref,
    o_ref,
    kv_ref, ctx_ref,
    *, num_heads, tq,
):
    # x block   : (1, T, C) full sequence of this batch element (f32)
    # bias block: (1, 1, T) additive key-padding bias (0 or -1e30)
    # output    : (1, TQ, C) query-tile rows
    # kv_ref    : (T, 2C) bf16 VMEM scratch, persists across q steps
    # ctx_ref   : (TQ, C) f32 VMEM scratch, per-head context slabs
    T = x_ref.shape[1]
    C = x_ref.shape[2]
    hd = C // num_heads

    q_idx = pl.program_id(1)
    q0 = pl.multiple_of(q_idx * tq, tq)

    # Full-sequence KV projection, computed ONCE per batch element (q axis is
    # "arbitrary", so q == 0 runs before every later q step on this core).
    @pl.when(q_idx == 0)
    def _():
        x_full_bf = x_ref[0].astype(jnp.bfloat16)                  # (T, C)
        kv = (jnp.dot(x_full_bf, wkv_ref[...],
                      preferred_element_type=jnp.float32)
              + bkv_ref[...])                                       # (T, 2C) f32
        kv_ref[...] = kv.astype(jnp.bfloat16)

    x_q = x_ref[0, pl.ds(q0, tq), :]                                # (TQ, C) f32
    x_q_bf = x_q.astype(jnp.bfloat16)

    # Q projection (1/sqrt(hd) scale is folded into wq/bq at init time).
    q = (jnp.dot(x_q_bf, wq_ref[...], preferred_element_type=jnp.float32)
         + bq_ref[...])                                             # (TQ, C) f32

    # Hoisted key-padding-bias broadcast (JAX does not CSE broadcast_in_dim).
    bias_b = jnp.broadcast_to(bias_ref[0], (tq, T))                 # (TQ, T)

    # Per-head attention; each head only touches (TQ, T)/(T, hd) slabs and
    # writes its context slab straight into VMEM scratch (no concatenate).
    for h in range(num_heads):
        lo, hi = h * hd, (h + 1) * hd
        q_h = q[:, lo:hi].astype(jnp.bfloat16)                      # (TQ, hd)
        k_h = kv_ref[:, lo:hi]                                      # (T, hd) bf16
        v_h = kv_ref[:, C + lo:C + hi]                              # (T, hd) bf16
        s = jax.lax.dot_general(
            q_h, k_h, (((1,), (1,)), ((), ())),
            preferred_element_type=jnp.float32)                     # (TQ, T)
        s = s + bias_b
        m = jnp.max(s, axis=-1, keepdims=True)
        p = jnp.exp(s - m)
        denom = jnp.sum(p, axis=-1, keepdims=True)
        p = p * pl.reciprocal(denom, approx=True)
        ctx_ref[:, lo:hi] = jnp.dot(p.astype(jnp.bfloat16), v_h,
                                    preferred_element_type=jnp.float32)

    # Single full-width output projection on the concatenated context.
    attn = (jnp.dot(ctx_ref[...].astype(jnp.bfloat16), wo_ref[...],
                    preferred_element_type=jnp.float32) + bo_ref[...])

    # residual + attention layer norm (f32)
    y = _layernorm(x_q + attn, ln1_g_ref[...], ln1_b_ref[...])

    # GeLU FFN on a (TQ, FFN) slab + residual + final layer norm
    h1 = _gelu(jnp.dot(y.astype(jnp.bfloat16), w1_ref[...],
                       preferred_element_type=jnp.float32) + b1_ref[...])
    h2 = (jnp.dot(h1.astype(jnp.bfloat16), w2_ref[...],
                  preferred_element_type=jnp.float32) + b2_ref[...])
    o_ref[0] = _layernorm(y + h2, ln2_g_ref[...], ln2_b_ref[...])


def decoder_kernel(rep_ref, w_ref, b_ref, o_ref):
    # out dim padded to a multiple of 128 lanes; wrapper slices back.
    o_ref[...] = (jnp.dot(rep_ref[...].astype(jnp.bfloat16), w_ref[...],
                          preferred_element_type=jnp.float32) + b_ref[...])


# ---------------------------------------------------------------------------
# Pallas wrappers
# ---------------------------------------------------------------------------
def embed_norm(x, keep, gamma, beta, *, rows):
    B, T, C = x.shape
    assert T % rows == 0
    return pl.pallas_call(
        embed_norm_kernel,
        out_shape=jax.ShapeDtypeStruct((B, T, C), jnp.float32),
        grid=(B, T // rows),
        in_specs=[
            pl.BlockSpec((1, rows, C), lambda b, r: (b, r, 0)),
            pl.BlockSpec((1, rows, 1), lambda b, r: (b, r, 0)),
            _const_spec((1, C)),
            _const_spec((1, C)),
        ],
        out_specs=pl.BlockSpec((1, rows, C), lambda b, r: (b, r, 0)),
        compiler_params=pltpu.CompilerParams(
            dimension_semantics=("parallel", "parallel"),
            vmem_limit_bytes=VMEM_LIMIT),
    )(x, keep, gamma, beta)


def transformer_layer(x, attn_bias, lyr, *, num_heads, tq):
    B, T, C = x.shape
    F = lyr["w1"].shape[1]
    assert T % tq == 0

    in_specs = [
        # x: full sequence of one batch element; q-invariant index_map, so the
        # DMA only happens when the batch index changes.
        pl.BlockSpec((1, T, C), lambda b, q: (b, 0, 0)),
        pl.BlockSpec((1, 1, T), lambda b, q: (b, 0, 0)),   # key-pad bias
        _const_spec((C, C)), _const_spec((1, C)),          # wq, bq (pre-scaled)
        _const_spec((C, 2 * C)), _const_spec((1, 2 * C)),  # wkv, bkv
        _const_spec((C, C)), _const_spec((1, C)),          # wo, bo
        _const_spec((1, C)), _const_spec((1, C)),          # ln1 g, b
        _const_spec((C, F)), _const_spec((1, F)),          # w1, b1
        _const_spec((F, C)), _const_spec((1, C)),          # w2, b2
        _const_spec((1, C)), _const_spec((1, C)),          # ln2 g, b
    ]
    kernel = functools.partial(transformer_layer_kernel,
                               num_heads=num_heads, tq=tq)
    return pl.pallas_call(
        kernel,
        out_shape=jax.ShapeDtypeStruct((B, T, C), jnp.float32),
        grid=(B, T // tq),
        in_specs=in_specs,
        out_specs=pl.BlockSpec((1, tq, C), lambda b, q: (b, q, 0)),
        scratch_shapes=[
            pltpu.VMEM((T, 2 * C), jnp.bfloat16),   # cached K/V for this batch
            pltpu.VMEM((tq, C), jnp.float32),       # per-head context slabs
        ],
        compiler_params=pltpu.CompilerParams(
            # Batch axis is parallel (megacore-shardable).  The query-tile
            # axis MUST be "arbitrary": the KV scratch is filled at q == 0
            # and reused sequentially by later q steps on the same core.
            dimension_semantics=("parallel", "arbitrary"),
            vmem_limit_bytes=VMEM_LIMIT),
    )(x, attn_bias,
      lyr["wq"], lyr["bq"], lyr["wkv"], lyr["bkv"], lyr["wo"], lyr["bo"],
      lyr["ln1_g"], lyr["ln1_b"], lyr["w1"], lyr["b1"], lyr["w2"], lyr["b2"],
      lyr["ln2_g"], lyr["ln2_b"])


def mlp_decode(rep, w, b):
    return pl.pallas_call(
        decoder_kernel,
        out_shape=jax.ShapeDtypeStruct((rep.shape[0], w.shape[1]), jnp.float32),
        in_specs=[_vmem_full(), _vmem_full(), _vmem_full()],
        out_specs=_vmem_full(),
        compiler_params=pltpu.CompilerParams(vmem_limit_bytes=VMEM_LIMIT),
    )(rep, w, b)


# ---------------------------------------------------------------------------
# Parameters (deterministic synthetic init, mirrors init_params semantics:
#   Linear / Embedding weights ~ N(0, 0.02), biases zero, LN weight=1 bias=0,
#   embedding padding_idx row zeroed).  Matmul weights are stored bf16
#   (lane-dense, fused KV); the 1/sqrt(head_dim) attention scale is folded
#   into wq/bq; biases / LN params / embeddings stay f32.
# ---------------------------------------------------------------------------
def make_params(key, *, vocab_size, embedding_dim, num_heads, num_layers,
                max_positions, ffn_dim, out_dim, dense_dim=0):
    C = embedding_dim
    hd = C // num_heads
    scale = float(hd) ** -0.5
    n_keys = 3 + num_layers * 5
    keys = iter(jax.random.split(key, n_keys))

    def normal(shape, dtype=jnp.float32):
        return (0.02 * jax.random.normal(next(keys), shape, jnp.float32)
                ).astype(dtype)

    out_pad = ((out_dim + 127) // 128) * 128
    params = {
        "token_emb": normal((vocab_size, C)).at[PAD_IDX].set(0.0),
        "pos_emb": normal((max_positions, C)).at[PAD_IDX].set(0.0),
        "emb_ln_g": jnp.ones((1, C), jnp.float32),
        "emb_ln_b": jnp.zeros((1, C), jnp.float32),
        "layers": [],
        "out_dim": out_dim,
    }
    for _ in range(num_layers):
        params["layers"].append(dict(
            wq=(normal((C, C)) * scale).astype(jnp.bfloat16),   # scale folded in
            bq=jnp.zeros((1, C), jnp.float32) * scale,
            wkv=normal((C, 2 * C), jnp.bfloat16),
            bkv=jnp.zeros((1, 2 * C), jnp.float32),
            wo=normal((C, C), jnp.bfloat16),
            bo=jnp.zeros((1, C), jnp.float32),
            ln1_g=jnp.ones((1, C), jnp.float32),
            ln1_b=jnp.zeros((1, C), jnp.float32),
            w1=normal((C, ffn_dim), jnp.bfloat16),
            b1=jnp.zeros((1, ffn_dim), jnp.float32),
            w2=normal((ffn_dim, C), jnp.bfloat16),
            b2=jnp.zeros((1, C), jnp.float32),
            ln2_g=jnp.ones((1, C), jnp.float32),
            ln2_b=jnp.zeros((1, C), jnp.float32),
        ))
    dec_w = normal((C + dense_dim, out_dim))
    params["dec_w"] = (jnp.zeros((C + dense_dim, out_pad), jnp.float32)
                       .at[:, :out_dim].set(dec_w).astype(jnp.bfloat16))
    params["dec_b"] = jnp.zeros((1, out_pad), jnp.float32)
    return params


# ---------------------------------------------------------------------------
# Full forward (RobertaModel.forward semantics, eval mode)
# ---------------------------------------------------------------------------
def roberta_forward(params, inputs, *, num_heads, tq=None):
    tokens = inputs["token_ids"]                       # (B, T) int32
    dense = inputs.get("dense", None)
    B, T = tokens.shape

    tq = _tile(T, 128) if tq is None else tq           # tall query tiles
    rows = _tile(T, 512)                               # embed-LN row tile

    pad = tokens == PAD_IDX
    pad_f = pad.astype(jnp.float32)
    keep = (1.0 - pad_f)[..., None]                    # (B, T, 1)
    attn_bias = (pad_f * NEG_BIG)[:, None, :]          # (B, 1, T) additive mask

    # make_positions: cumsum of non-pad mask * mask + pad_index
    not_pad = (~pad).astype(jnp.int32)
    positions = jnp.cumsum(not_pad, axis=1) * not_pad + PAD_IDX

    # embedding gathers (glue)
    x = params["token_emb"][tokens] + params["pos_emb"][positions]  # (B, T, C)

    # embedding layer norm + pad zeroing (Pallas, memory-bound -> big tiles)
    x = embed_norm(x, keep, params["emb_ln_g"], params["emb_ln_b"], rows=rows)

    # encoder layers (Pallas, one tiled call per layer)
    for lyr in params["layers"]:
        x = transformer_layer(x, attn_bias, lyr, num_heads=num_heads, tq=tq)

    # sentence representation = first token of last layer; output_dropout is
    # identity at inference.
    rep = x[:, 0, :]                                   # (B, C)
    if dense is not None:
        rep = jnp.concatenate([rep, dense.astype(jnp.float32)], axis=1)

    # MLP decoder (single Linear, no hidden dims) (Pallas, lane-padded output)
    out = mlp_decode(rep, params["dec_w"], params["dec_b"])
    return out[:, :params["out_dim"]]


# ---------------------------------------------------------------------------
if __name__ == "__main__":
    # Small, RoBERTa-consistent shapes (lane-dense C = 128).
    B, T = 2, 256
    VOCAB = 100
    EMB = 128
    HEADS = 4
    LAYERS = 2
    FFN = 4 * EMB
    OUT_DIM = 2
    MAX_POS = 512

    key = jax.random.PRNGKey(0)
    k_params, k_tok = jax.random.split(key)

    params = make_params(
        k_params, vocab_size=VOCAB, embedding_dim=EMB, num_heads=HEADS,
        num_layers=LAYERS, max_positions=MAX_POS, ffn_dim=FFN,
        out_dim=OUT_DIM, dense_dim=0,
    )

    tokens = jax.random.randint(k_tok, (B, T), 2, VOCAB, dtype=jnp.int32)
    tokens = tokens.at[:, -5:].set(PAD_IDX)   # exercise the key padding mask

    out = roberta_forward(params, {"token_ids": tokens}, num_heads=HEADS)
    out = jax.block_until_ready(out)
    assert out.shape == (B, OUT_DIM), out.shape
    assert bool(jnp.all(jnp.isfinite(out)))
    print("KERNEL_OK")
</pallas_src>

<mosaic_0001>
module attributes {stable_mosaic.version = 11 : i64} {
  func.func @embed_norm_kernel(%arg0: i32, %arg1: i32, %arg2: memref<1x256x128xf32, #tpu.memory_space<vmem>>, %arg3: memref<1x256x1xf32, #tpu.memory_space<vmem>>, %arg4: memref<1x128xf32, #tpu.memory_space<vmem>>, %arg5: memref<1x128xf32, #tpu.memory_space<vmem>>, %arg6: memref<1x256x128xf32, #tpu.memory_space<vmem>>) attributes {dimension_semantics = [#tpu.dimension_semantics<parallel>, #tpu.dimension_semantics<parallel>], iteration_bounds = array<i64: 2, 1>, scalar_prefetch = 0 : i64, scratch_operands = 0 : i64, tpu.core_type = #tpu.core_type<tc>, window_params = [{transform_indices = @transform_0, window_bounds = array<i64: 1, 256, 128>}, {transform_indices = @transform_1, window_bounds = array<i64: 1, 256, 1>}, {pipeline_mode = #tpu.pipeline_mode<synchronous>, transform_indices = @transform_2, window_bounds = array<i64: 1, 128>}, {pipeline_mode = #tpu.pipeline_mode<synchronous>, transform_indices = @transform_3, window_bounds = array<i64: 1, 128>}, {transform_indices = @transform_4, window_bounds = array<i64: 1, 256, 128>}]} {
    %c0 = arith.constant 0 : index
    %c0_0 = arith.constant 0 : index
    %c0_1 = arith.constant 0 : index
    %0 = vector.load %arg2[%c0, %c0_0, %c0_1] : memref<1x256x128xf32, #tpu.memory_space<vmem>>, vector<1x256x128xf32>
    %1 = vector.shape_cast %0 : vector<1x256x128xf32> to vector<256x128xf32>
    %c0_2 = arith.constant 0 : index
    %c0_3 = arith.constant 0 : index
    %2 = vector.load %arg4[%c0_2, %c0_3] : memref<1x128xf32, #tpu.memory_space<vmem>>, vector<1x128xf32>
    %c0_4 = arith.constant 0 : index
    %c0_5 = arith.constant 0 : index
    %3 = vector.load %arg5[%c0_4, %c0_5] : memref<1x128xf32, #tpu.memory_space<vmem>>, vector<1x128xf32>
    %cst = arith.constant dense<0.000000e+00> : vector<256xf32>
    %4 = vector.multi_reduction <add>, %1, %cst [1] : vector<256x128xf32> to vector<256xf32>
    %5 = vector.shape_cast %4 : vector<256xf32> to vector<256x1xf32>
    %cst_6 = arith.constant 1.280000e+02 : f32
    %6 = vector.broadcast %cst_6 : f32 to vector<256x1xf32>
    %7 = arith.divf %5, %6 : vector<256x1xf32>
    %8 = vector.broadcast %7 : vector<256x1xf32> to vector<256x128xf32>
    %9 = arith.subf %1, %8 : vector<256x128xf32>
    %10 = arith.mulf %9, %9 : vector<256x128xf32>
    %cst_7 = arith.constant dense<0.000000e+00> : vector<256xf32>
    %11 = vector.multi_reduction <add>, %10, %cst_7 [1] : vector<256x128xf32> to vector<256xf32>
    %12 = vector.shape_cast %11 : vector<256xf32> to vector<256x1xf32>
    %cst_8 = arith.constant 1.280000e+02 : f32
    %13 = vector.broadcast %cst_8 : f32 to vector<256x1xf32>
    %14 = arith.divf %12, %13 : vector<256x1xf32>
    %15 = vector.broadcast %7 : vector<256x1xf32> to vector<256x128xf32>
    %16 = arith.subf %1, %15 : vector<256x128xf32>
    %cst_9 = arith.constant 9.99999974E-6 : f32
    %17 = vector.broadcast %cst_9 : f32 to vector<256x1xf32>
    %18 = arith.addf %14, %17 : vector<256x1xf32>
    %19 = math.rsqrt %18 : vector<256x1xf32>
    %20 = vector.broadcast %19 : vector<256x1xf32> to vector<256x128xf32>
    %21 = arith.mulf %16, %20 : vector<256x128xf32>
    %22 = vector.broadcast %2 : vector<1x128xf32> to vector<256x128xf32>
    %23 = arith.mulf %21, %22 : vector<256x128xf32>
    %24 = vector.broadcast %3 : vector<1x128xf32> to vector<256x128xf32>
    %25 = arith.addf %23, %24 : vector<256x128xf32>
    %c0_10 = arith.constant 0 : index
    %c0_11 = arith.constant 0 : index
    %c0_12 = arith.constant 0 : index
    %26 = vector.load %arg3[%c0_10, %c0_11, %c0_12] : memref<1x256x1xf32, #tpu.memory_space<vmem>>, vector<1x256x1xf32>
    %27 = vector.shape_cast %26 : vector<1x256x1xf32> to vector<256x1xf32>
    %28 = vector.broadcast %27 : vector<256x1xf32> to vector<256x128xf32>
    %29 = arith.mulf %25, %28 : vector<256x128xf32>
    %c0_13 = arith.constant 0 : index
    %c0_14 = arith.constant 0 : index
    %c0_15 = arith.constant 0 : index
    %30 = vector.load %arg6[%c0_13, %c0_14, %c0_15] : memref<1x256x128xf32, #tpu.memory_space<vmem>>, vector<1x256x128xf32>
    %31 = vector.shape_cast %30 : vector<1x256x128xf32> to vector<256x128xf32>
    %32 = vector.shape_cast %29 : vector<256x128xf32> to vector<1x256x128xf32>
    tpu.vector_store %arg6[%c0_13, %c0_14, %c0_15], %32 {strides = array<i32>} : memref<1x256x128xf32, #tpu.memory_space<vmem>>, vector<1x256x128xf32>,
    return
  }
  func.func @transform_0(%arg0: i32, %arg1: i32) -> (i32, i32, i32) {
    %c0_i32 = arith.constant 0 : i32
    %c0_i32_0 = arith.constant 0 : i32
    return %arg0, %arg1, %c0_i32 : i32, i32, i32
  }
  func.func @transform_1(%arg0: i32, %arg1: i32) -> (i32, i32, i32) {
    %c0_i32 = arith.constant 0 : i32
    %c0_i32_0 = arith.constant 0 : i32
    return %arg0, %arg1, %c0_i32 : i32, i32, i32
  }
  func.func @transform_2(%arg0: i32, %arg1: i32) -> (i32, i32) {
    %c0_i32 = arith.constant 0 : i32
    %c0_i32_0 = arith.constant 0 : i32
    %c0_i32_1 = arith.constant 0 : i32
    return %c0_i32, %c0_i32_0 : i32, i32
  }
  func.func @transform_3(%arg0: i32, %arg1: i32) -> (i32, i32) {
    %c0_i32 = arith.constant 0 : i32
    %c0_i32_0 = arith.constant 0 : i32
    %c0_i32_1 = arith.constant 0 : i32
    return %c0_i32, %c0_i32_0 : i32, i32
  }
  func.func @transform_4(%arg0: i32, %arg1: i32) -> (i32, i32, i32) {
    %c0_i32 = arith.constant 0 : i32
    %c0_i32_0 = arith.constant 0 : i32
    return %arg0, %arg1, %c0_i32 : i32, i32, i32
  }
}

</mosaic_0001>

<llo_original>
// kernel: tpu_custom_call.1
$region0: #{tpu_custom_call.1}
  #allocation0 [shape = 'u32[]', space=smem, size = 0x4, offset = 0x4, fixed_abs, tag = 'smem constant byte address 0x4 - core index']
  #allocation1 [shape = 'u32[72,128]{1,0:T(1,128)}', space=vmem, size = 0x9000, scoped, tag = 'internal scratch']
  %s0 = inlined_call_operand.vmem [shape: f32[2,256,128], index: 0, kind: input, shape index: {}]
  %s1 = inlined_call_operand.vmem [shape: f32[2,256,1], index: 1, kind: input, shape index: {}]
  %s2 = inlined_call_operand.vmem [shape: f32[1,128], index: 2, kind: input, shape index: {}]
  %s3 = inlined_call_operand.vmem [shape: f32[1,128], index: 3, kind: input, shape index: {}]
  %s4 = inlined_call_operand.hbm [shape: f32[2,256,128], index: 4, kind: output, shape index: {}]
  %s5 = sld [smem:[#allocation0]]
  $region49: #{tpu_custom_call.1} parent=0
    _
  %s7 = ssub.s32 1, %s5
  %s8 = scalar_select 0, %s7, %s5
  $region1: #{tpu_custom_call.1} parent=0
    #allocation2 [shape = 'u8[262144]{0}', space=vmem, size = 0x40000, scoped, tag = 'output window, operand 0']
    #allocation3 [shape = 's32[2]{0}', space=sflag, size = 0x8, scoped, tag = 'scoped memory for tpu_custom_call.1']
    %9 = vsyncpa [#allocation3], 0
    %s10 = scalar_lea.sflag [#allocation3], 1
    %11 = vsyncpa %s10, 0
    loop: start=0, step=1, limit=4
    $region2: #{tpu_custom_call.1} parent=1 // loop_pre_header
      _
    $region3: #{tpu_custom_call.1} parent=1 // loop_header
      %s13 = sphi 0, %s17
      %p14 = scmp.ge.s32.totalorder %s13, 4
      %s20 = sphi 0, %s32
      %s21 = sphi 0, %s28
      %s22 = sphi 0, %s20
      %s23 = sphi 0, %s21
      %s24 = sphi 0, %s22
      %s25 = sphi 0, %s23
      %s37 = sphi 0, %s39
      %s40 = sphi 0, %s37
      %s41 = sphi 0, %s40
      %s57 = sphi 0, %s41
      %s65 = sphi 0, %s67
      %s68 = sphi 0, %s65
      %s69 = sphi 0, %s68
      %s85 = sphi 0, %s69
      %s89 = sphi 0, %s89
      %s91 = sphi 0, %s89
      %s92 = sphi 0, %s91
      %s106 = sphi 0, %s92
      %s110 = sphi 0, %s110
      %s112 = sphi 0, %s110
      %s113 = sphi 0, %s112
      %s127 = sphi 0, %s113
      %s135 = sphi 0, %s137
      %s138 = sphi 0, %s135
      %s139 = sphi 0, %s138
      %s155 = sphi 0, %s139
    $region4: #{tpu_custom_call.1} parent=1 // loop_header_branch
      %16 = sbr.rel (%p14) target = $region8
    $region5: #{tpu_custom_call.1} parent=1 // loop_body
      %s18 = ssub.s32 %s13, 1
      %s19 = ssub.s32 %s13, 2
      %s26 = sadd.s32 1, %s21
      %p27 = scmp.ge.s32.totalorder %s26, 1
      %s28 = scalar_select %p27, 0, %s26
      %s29 = sadd.s32 1, %s20
      %s30 = scalar_select %p27, %s29, %s20
      %p31 = scmp.ge.s32.totalorder %s30, 2
      %s32 = scalar_select %p31, 0, %s30
      %s33 = ssub.s32 %s20, %s32
      %s34 = ssub.s32 %s21, %s28
      %s35 = sor.u32 %s33, %s34
      %p36 = scmp.eq.s32.totalorder %s35, 0
      %s38 = sadd.s32 %s37, 1
      %s39 = scalar_select %p36, %s37, %s38
      %p42 = pneg %p36
      %p43 = scmp.eq.s32.totalorder %s13, 1
      %p44 = por %p42, %p43
      %p45 = scmp.ne.s32.totalorder %s37, %s40
      %p46 = scmp.eq.s32.totalorder %s13, 0
      %p47 = por %p45, %p46
      %p48 = scmp.ne.s32.totalorder %s37, %s40
      %p49 = scmp.eq.s32.totalorder %s18, 1
      %p50 = por %p48, %p49
      %p51 = scmp.ne.s32.totalorder %s40, %s41
      %p52 = scmp.eq.s32.totalorder %s18, 0
      %p53 = por %p51, %p52
      %p54 = scmp.ne.s32.totalorder %s40, %s41
      %p55 = scmp.eq.s32.totalorder %s19, 1
      %p56 = por %p54, %p55
      %p58 = scmp.ne.s32.totalorder %s41, %s57
      %p59 = scmp.eq.s32.totalorder %s19, 0
      %p60 = por %p58, %p59
      %s61 = ssub.s32 %s20, %s32
      %s62 = ssub.s32 %s21, %s28
      %s63 = sor.u32 %s61, %s62
      %p64 = scmp.eq.s32.totalorder %s63, 0
      %s66 = sadd.s32 %s65, 1
      %s67 = scalar_select %p64, %s65, %s66
      %p70 = pneg %p64
      %p71 = scmp.eq.s32.totalorder %s13, 1
      %p72 = por %p70, %p71
      %p73 = scmp.ne.s32.totalorder %s65, %s68
      %p74 = scmp.eq.s32.totalorder %s13, 0
      %p75 = por %p73, %p74
      %p76 = scmp.ne.s32.totalorder %s65, %s68
      %p77 = scmp.eq.s32.totalorder %s18, 1
      %p78 = por %p76, %p77
      %p79 = scmp.ne.s32.totalorder %s68, %s69
      %p80 = scmp.eq.s32.totalorder %s18, 0
      %p81 = por %p79, %p80
      %p82 = scmp.ne.s32.totalorder %s68, %s69
      %p83 = scmp.eq.s32.totalorder %s19, 1
      %p84 = por %p82, %p83
      %p86 = scmp.ne.s32.totalorder %s69, %s85
      %p87 = scmp.eq.s32.totalorder %s19, 0
      %p88 = por %p86, %p87
      %s90 = sadd.s32 %s89, 1
      %p93 = scmp.eq.s32.totalorder %s13, 1
      %p94 = scmp.ne.s32.totalorder %s89, %s91
      %p95 = scmp.eq.s32.totalorder %s13, 0
      %p96 = por %p94, %p95
      %p97 = scmp.ne.s32.totalorder %s89, %s91
      %p98 = scmp.eq.s32.totalorder %s18, 1
      %p99 = por %p97, %p98
      %p100 = scmp.ne.s32.totalorder %s91, %s92
      %p101 = scmp.eq.s32.totalorder %s18, 0
      %p102 = por %p100, %p101
      %p103 = scmp.ne.s32.totalorder %s91, %s92
      %p104 = scmp.eq.s32.totalorder %s19, 1
      %p105 = por %p103, %p104
      %p107 = scmp.ne.s32.totalorder %s92, %s106
      %p108 = scmp.eq.s32.totalorder %s19, 0
      %p109 = por %p107, %p108
      %s111 = sadd.s32 %s110, 1
      %p114 = scmp.eq.s32.totalorder %s13, 1
      %p115 = scmp.ne.s32.totalorder %s110, %s112
      %p116 = scmp.eq.s32.totalorder %s13, 0
      %p117 = por %p115, %p116
      %p118 = scmp.ne.s32.totalorder %s110, %s112
      %p119 = scmp.eq.s32.totalorder %s18, 1
      %p120 = por %p118, %p119
      %p121 = scmp.ne.s32.totalorder %s112, %s113
      %p122 = scmp.eq.s32.totalorder %s18, 0
      %p123 = por %p121, %p122
      %p124 = scmp.ne.s32.totalorder %s112, %s113
      %p125 = scmp.eq.s32.totalorder %s19, 1
      %p126 = por %p124, %p125
      %p128 = scmp.ne.s32.totalorder %s113, %s127
      %p129 = scmp.eq.s32.totalorder %s19, 0
      %p130 = por %p128, %p129
      %s131 = ssub.s32 %s20, %s32
      %s132 = ssub.s32 %s21, %s28
      %s133 = sor.u32 %s131, %s132
      %p134 = scmp.eq.s32.totalorder %s133, 0
      %s136 = sadd.s32 %s135, 1
      %s137 = scalar_select %p134, %s135, %s136
      %p140 = pneg %p134
      %p141 = scmp.eq.s32.totalorder %s13, 1
      %p142 = por %p140, %p141
      %p143 = scmp.ne.s32.totalorder %s135, %s138
      %p144 = scmp.eq.s32.totalorder %s13, 0
      %p145 = por %p143, %p144
      %p146 = scmp.ne.s32.totalorder %s135, %s138
      %p147 = scmp.eq.s32.totalorder %s18, 1
      %p148 = por %p146, %p147
      %p149 = scmp.ne.s32.totalorder %s138, %s139
      %p150 = scmp.eq.s32.totalorder %s18, 0
      %p151 = por %p149, %p150
      %p152 = scmp.ne.s32.totalorder %s138, %s139
      %p153 = scmp.eq.s32.totalorder %s19, 1
      %p154 = por %p152, %p153
      %p156 = scmp.ne.s32.totalorder %s139, %s155
      %p157 = scmp.eq.s32.totalorder %s19, 0
      %p158 = por %p156, %p157
      %p159 = scmp.le.s32.totalorder 1, %s13
      %p160 = scmp.lt.s32.totalorder %s13, 3
      %p161 = pnand %p159, %p160
      %p162 = pneg %p161
      // Predicated region
      $region9: #{tpu_custom_call.1} parent=5 // pred_check
        _
      $region10: #{tpu_custom_call.1} parent=5 // pred_check_branch
        %164 = sbr.rel (%p161) target = $region12
      $region11: #{tpu_custom_call.1} parent=5 // pred_region
        %s165 = ssub.s32 %s13, 1
        // Predicated region
        $region13: #{tpu_custom_call.1} parent=11 // pred_check
          %p166 = pneg %p102
        $region14: #{tpu_custom_call.1} parent=11 // pred_check_branch
          %168 = sbr.rel (%p166) target = $region16
        $region15: #{tpu_custom_call.1} parent=11 // pred_region
          _
        $region16: #{tpu_custom_call.1} parent=11 // pred_fallthru
          _
        // Predicated region
        $region17: #{tpu_custom_call.1} parent=11 // pred_check
          %p169 = pneg %p123
        $region18: #{tpu_custom_call.1} parent=11 // pred_check_branch
          %171 = sbr.rel (%p169) target = $region20
        $region19: #{tpu_custom_call.1} parent=11 // pred_region
          _
        $region20: #{tpu_custom_call.1} parent=11 // pred_fallthru
          _
      $region12: #{tpu_custom_call.1} parent=5 // pred_fallthru
        _
      %p172 = scmp.lt.s32.totalorder %s13, 2
      // Predicated region
      $region21: #{tpu_custom_call.1} parent=5 // pred_check
        %p173 = pneg %p172
      $region22: #{tpu_custom_call.1} parent=5 // pred_check_branch
        %175 = sbr.rel (%p173) target = $region24
      $region23: #{tpu_custom_call.1} parent=5 // pred_region
        // Predicated region
        $region25: #{tpu_custom_call.1} parent=23 // pred_check
          %p176 = pneg %p47
        $region26: #{tpu_custom_call.1} parent=23 // pred_check_branch
          %178 = sbr.rel (%p176) target = $region28
        $region27: #{tpu_custom_call.1} parent=23 // pred_region
          %s179 = smul.u32 32, %s21
          %p180 = scmp.lt.s32.totalorder %s20, 1
          %s181 = scalar_select %p180, %s20, 1
          %p182 = scmp.lt.s32.totalorder %s179, 31
          %s183 = scalar_select %p182, %s179, 31
          %s184 = smul.addr %s181, 32
          %s185 = sadd.s32 %s183, %s184
          %s186 = smul.addr %s185, 8
          %s187 = scalar_lea.vmem %s0, %s186
          %s188 = smul.u32 32, %s21
        $region28: #{tpu_custom_call.1} parent=23 // pred_fallthru
          _
        // Predicated region
        $region29: #{tpu_custom_call.1} parent=23 // pred_check
          %p189 = pneg %p75
        $region30: #{tpu_custom_call.1} parent=23 // pred_check_branch
          %191 = sbr.rel (%p189) target = $region32
        $region31: #{tpu_custom_call.1} parent=23 // pred_region
          %s192 = smul.u32 32, %s21
          %p193 = scmp.lt.s32.totalorder %s20, 1
          %s194 = scalar_select %p193, %s20, 1
          %p195 = scmp.lt.s32.totalorder %s192, 31
          %s196 = scalar_select %p195, %s192, 31
          %s197 = smul.addr %s194, 32
          %s198 = sadd.s32 %s196, %s197
          %s199 = smul.addr %s198, 8
          %s200 = scalar_lea.vmem %s1, %s199
          %s201 = smul.u32 32, %s21
        $region32: #{tpu_custom_call.1} parent=23 // pred_fallthru
          _
      $region24: #{tpu_custom_call.1} parent=5 // pred_fallthru
        _
      %p202 = scmp.le.s32.totalorder 1, %s13
      %p203 = scmp.lt.s32.totalorder %s13, 3
      %p204 = pnand %p202, %p203
      %p205 = pneg %p204
      // Predicated region
      $region33: #{tpu_custom_call.1} parent=5 // pred_check
        _
      $region34: #{tpu_custom_call.1} parent=5 // pred_check_branch
        %207 = sbr.rel (%p204) target = $region36
      $region35: #{tpu_custom_call.1} parent=5 // pred_region
        %s208 = ssub.s32 %s13, 1
        %s209 = smul.u32 32, %s23
        %p210 = scmp.lt.s32.totalorder %s22, 1
        %s211 = scalar_select %p210, %s22, 1
        %p212 = scmp.lt.s32.totalorder %s209, 31
        %s213 = scalar_select %p212, %s209, 31
        %s214 = smul.addr %s211, 32
        %s215 = sadd.s32 %s213, %s214
        %s216 = smul.addr %s215, 8
        %s217 = scalar_lea.vmem %s0, %s216
        %p218 = pneg %p53
        %p219 = pneg %p50
        %s220 = smul.u32 32, %s23
        %p221 = scmp.lt.s32.totalorder %s22, 1
        %s222 = scalar_select %p221, %s22, 1
        %p223 = scmp.lt.s32.totalorder %s220, 31
        %s224 = scalar_select %p223, %s220, 31
        %s225 = smul.addr %s222, 32
        %s226 = sadd.s32 %s224, %s225
        %s227 = smul.addr %s226, 8
        %s228 = scalar_lea.vmem %s1, %s227
        %p229 = pneg %p81
        %p230 = pneg %p78
        %p231 = pneg %p102
        %p232 = pneg %p99
        %p233 = pneg %p123
        %p234 = pneg %p120
        %p235 = pneg %p151
        %p236 = pneg %p148
        %s237 = sand.u32 %s138, 1
        %s238 = scalar_lea.sflag [#allocation3], %s237
        %s239 = sand.u32 %s138, 1
        %s240 = smul.addr %s239, 256
        %s241 = scalar_lea.vmem [#allocation2], %s240
        %s242 = smul.u32 32, %s23
        %p243 = scmp.lt.s32.totalorder %s22, 1
        %s244 = scalar_select %p243, %s22, 1
        %p245 = scmp.lt.s32.totalorder %s242, 31
        %s246 = scalar_select %p245, %s242, 31
        %s247 = smul.addr %s244, 32
        %s248 = sadd.s32 %s246, %s247
        %s249 = smul.addr %s248, 8
        %s250 = scalar_lea.vmem %s0, %s249
        %s251 = smul.u32 32, %s23
        %s252 = smul.u32 32, %s23
        %p253 = scmp.lt.s32.totalorder %s22, 1
        %s254 = scalar_select %p253, %s22, 1
        %p255 = scmp.lt.s32.totalorder %s252, 31
        %s256 = scalar_select %p255, %s252, 31
        %s257 = smul.addr %s254, 32
        %s258 = sadd.s32 %s256, %s257
        %s259 = smul.addr %s258, 8
        %s260 = scalar_lea.vmem %s1, %s259
        %s261 = smul.u32 32, %s23
        %s262 = smul.u32 32, %s23
        %v263 = vld [vmem:[%s250] sm:$0xff]
        %v264 = vld [vmem:[%s250 + $0x8] sm:$0xff]
        %v265 = vld [vmem:[%s250 + $0x10] sm:$0xff]
        %v266 = vld [vmem:[%s250 + $0x18] sm:$0xff]
        %v267 = vld [vmem:[%s250 + $0x20] sm:$0xff]
        %v268 = vld [vmem:[%s250 + $0x28] sm:$0xff]
        %v269 = vld [vmem:[%s250 + $0x30] sm:$0xff]
        %v270 = vld [vmem:[%s250 + $0x38] sm:$0xff]
        %v271 = vld [vmem:[%s250 + $0x40] sm:$0xff]
        %v272 = vld [vmem:[%s250 + $0x48] sm:$0xff]
        %v273 = vld [vmem:[%s250 + $0x50] sm:$0xff]
        %v274 = vld [vmem:[%s250 + $0x58] sm:$0xff]
        %v275 = vld [vmem:[%s250 + $0x60] sm:$0xff]
        %v276 = vld [vmem:[%s250 + $0x68] sm:$0xff]
        %v277 = vld [vmem:[%s250 + $0x70] sm:$0xff]
        %v278 = vld [vmem:[%s250 + $0x78] sm:$0xff]
        %v279 = vld [vmem:[%s250 + $0x80] sm:$0xff]
        %v280 = vld [vmem:[%s250 + $0x88] sm:$0xff]
        %v281 = vld [vmem:[%s250 + $0x90] sm:$0xff]
        %v282 = vld [vmem:[%s250 + $0x98] sm:$0xff]
        %v283 = vld [vmem:[%s250 + $0xa0] sm:$0xff]
        %v284 = vld [vmem:[%s250 + $0xa8] sm:$0xff]
        %v285 = vld [vmem:[%s250 + $0xb0] sm:$0xff]
        %v286 = vld [vmem:[%s250 + $0xb8] sm:$0xff]
        %v287 = vld [vmem:[%s250 + $0xc0] sm:$0xff]
        %v288 = vld [vmem:[%s250 + $0xc8] sm:$0xff]
        %v289 = vld [vmem:[%s250 + $0xd0] sm:$0xff]
        %v290 = vld [vmem:[%s250 + $0xd8] sm:$0xff]
        %v291 = vld [vmem:[%s250 + $0xe0] sm:$0xff]
        %v292 = vld [vmem:[%s250 + $0xe8] sm:$0xff]
        %v293 = vld [vmem:[%s250 + $0xf0] sm:$0xff]
        %v294 = vld [vmem:[%s250 + $0xf8] sm:$0xff]
        %v295 = vld [vmem:[%s2] sm:$0x1]
        %v296 = vld [vmem:[%s3] sm:$0x1]
        %297 = vadd.xlane.f32.xlu0 %v263
        %v298 = vpop.xlane.xlu0 %297
        %299 = vadd.xlane.f32.xlu0 %v264
        %v300 = vpop.xlane.xlu0 %299
        %301 = vadd.xlane.f32.xlu0 %v265
        %v302 = vpop.xlane.xlu0 %301
        %303 = vadd.xlane.f32.xlu0 %v266
        %v304 = vpop.xlane.xlu0 %303
        %305 = vadd.xlane.f32.xlu0 %v267
        %v306 = vpop.xlane.xlu0 %305
        %307 = vadd.xlane.f32.xlu0 %v268
        %v308 = vpop.xlane.xlu0 %307
        %309 = vadd.xlane.f32.xlu0 %v269
        %v310 = vpop.xlane.xlu0 %309
        %311 = vadd.xlane.f32.xlu0 %v270
        %v312 = vpop.xlane.xlu0 %311
        %313 = vadd.xlane.f32.xlu0 %v271
        %v314 = vpop.xlane.xlu0 %313
        %315 = vadd.xlane.f32.xlu0 %v272
        %v316 = vpop.xlane.xlu0 %315
        %317 = vadd.xlane.f32.xlu0 %v273
        %v318 = vpop.xlane.xlu0 %317
        %319 = vadd.xlane.f32.xlu0 %v274
        %v320 = vpop.xlane.xlu0 %319
        %321 = vadd.xlane.f32.xlu0 %v275
        %v322 = vpop.xlane.xlu0 %321
        %323 = vadd.xlane.f32.xlu0 %v276
        %v324 = vpop.xlane.xlu0 %323
        %325 = vadd.xlane.f32.xlu0 %v277
        %v326 = vpop.xlane.xlu0 %325
        %327 = vadd.xlane.f32.xlu0 %v278
        %v328 = vpop.xlane.xlu0 %327
        %329 = vadd.xlane.f32.xlu0 %v279
        %v330 = vpop.xlane.xlu0 %329
        %331 = vadd.xlane.f32.xlu0 %v280
        %v332 = vpop.xlane.xlu0 %331
        %333 = vadd.xlane.f32.xlu0 %v281
        %v334 = vpop.xlane.xlu0 %333
        %335 = vadd.xlane.f32.xlu0 %v282
        %v336 = vpop.xlane.xlu0 %335
        %337 = vadd.xlane.f32.xlu0 %v283
        %v338 = vpop.xlane.xlu0 %337
        %339 = vadd.xlane.f32.xlu0 %v284
        %v340 = vpop.xlane.xlu0 %339
        %341 = vadd.xlane.f32.xlu0 %v285
        %v342 = vpop.xlane.xlu0 %341
        %343 = vadd.xlane.f32.xlu0 %v286
        %v344 = vpop.xlane.xlu0 %343
        %345 = vadd.xlane.f32.xlu0 %v287
        %v346 = vpop.xlane.xlu0 %345
        %347 = vadd.xlane.f32.xlu0 %v288
        %v348 = vpop.xlane.xlu0 %347
        %349 = vadd.xlane.f32.xlu0 %v289
        %v350 = vpop.xlane.xlu0 %349
        %351 = vadd.xlane.f32.xlu0 %v290
        %v352 = vpop.xlane.xlu0 %351
        %353 = vadd.xlane.f32.xlu0 %v291
        %v354 = vpop.xlane.xlu0 %353
        %355 = vadd.xlane.f32.xlu0 %v292
        %v356 = vpop.xlane.xlu0 %355
        %357 = vadd.xlane.f32.xlu0 %v293
        %v358 = vpop.xlane.xlu0 %357
        %359 = vadd.xlane.f32.xlu0 %v294
        %v360 = vpop.xlane.xlu0 %359
        %v361 = vrcp.pop 128.0
        %v362 = vmul.f32 128.0, %v361
        %v363 = vsub.f32 1.0, %v362
        %v364 = vmul.f32 %v361, %v363
        %v365 = vadd.f32 %v361, %v364
        %vm366 = vweird.f32 %v361
        %v367 = vsel %vm366, %v361, %v365
        %v368 = vmul.f32 %v298, %v367
        %v369 = vmul.f32 %v300, %v367
        %v370 = vmul.f32 %v302, %v367
        %v371 = vmul.f32 %v304, %v367
        %v372 = vmul.f32 %v306, %v367
        %v373 = vmul.f32 %v308, %v367
        %v374 = vmul.f32 %v310, %v367
        %v375 = vmul.f32 %v312, %v367
        %v376 = vmul.f32 %v314, %v367
        %v377 = vmul.f32 %v316, %v367
        %v378 = vmul.f32 %v318, %v367
        %v379 = vmul.f32 %v320, %v367
        %v380 = vmul.f32 %v322, %v367
        %v381 = vmul.f32 %v324, %v367
        %v382 = vmul.f32 %v326, %v367
        %v383 = vmul.f32 %v328, %v367
        %v384 = vmul.f32 %v330, %v367
        %v385 = vmul.f32 %v332, %v367
        %v386 = vmul.f32 %v334, %v367
        %v387 = vmul.f32 %v336, %v367
        %v388 = vmul.f32 %v338, %v367
        %v389 = vmul.f32 %v340, %v367
        %v390 = vmul.f32 %v342, %v367
        %v391 = vmul.f32 %v344, %v367
        %v392 = vmul.f32 %v346, %v367
        %v393 = vmul.f32 %v348, %v367
        %v394 = vmul.f32 %v350, %v367
        %v395 = vmul.f32 %v352, %v367
        %v396 = vmul.f32 %v354, %v367
        %v397 = vmul.f32 %v356, %v367
        %v398 = vmul.f32 %v358, %v367
        %v399 = vmul.f32 %v360, %v367
        %v400 = vsub.f32 %v263, %v368
        %v401 = vsub.f32 %v264, %v369
        %v402 = vsub.f32 %v265, %v370
        %v403 = vsub.f32 %v266, %v371
        %v404 = vsub.f32 %v267, %v372
        %v405 = vsub.f32 %v268, %v373
        %v406 = vsub.f32 %v269, %v374
        %v407 = vsub.f32 %v270, %v375
        %v408 = vsub.f32 %v271, %v376
        %v409 = vsub.f32 %v272, %v377
        %v410 = vsub.f32 %v273, %v378
        %v411 = vsub.f32 %v274, %v379
        %v412 = vsub.f32 %v275, %v380
        %v413 = vsub.f32 %v276, %v381
        %v414 = vsub.f32 %v277, %v382
        %v415 = vsub.f32 %v278, %v383
        %v416 = vsub.f32 %v279, %v384
        %v417 = vsub.f32 %v280, %v385
        %v418 = vsub.f32 %v281, %v386
        %v419 = vsub.f32 %v282, %v387
        %v420 = vsub.f32 %v283, %v388
        %v421 = vsub.f32 %v284, %v389
        %v422 = vsub.f32 %v285, %v390
        %v423 = vsub.f32 %v286, %v391
        %v424 = vsub.f32 %v287, %v392
        %v425 = vsub.f32 %v288, %v393
        %v426 = vsub.f32 %v289, %v394
        %v427 = vsub.f32 %v290, %v395
        %v428 = vsub.f32 %v291, %v396
        %v429 = vsub.f32 %v292, %v397
        %v430 = vsub.f32 %v293, %v398
        %v431 = vsub.f32 %v294, %v399
        %v432 = vmul.f32 %v400, %v400
        %v433 = vmul.f32 %v401, %v401
        %v434 = vmul.f32 %v402, %v402
        %v435 = vmul.f32 %v403, %v403
        %v436 = vmul.f32 %v404, %v404
        %v437 = vmul.f32 %v405, %v405
        %v438 = vmul.f32 %v406, %v406
        %v439 = vmul.f32 %v407, %v407
        %v440 = vmul.f32 %v408, %v408
        %v441 = vmul.f32 %v409, %v409
        %v442 = vmul.f32 %v410, %v410
        %v443 = vmul.f32 %v411, %v411
        %v444 = vmul.f32 %v412, %v412
        %v445 = vmul.f32 %v413, %v413
        %v446 = vmul.f32 %v414, %v414
        %v447 = vmul.f32 %v415, %v415
        %v448 = vmul.f32 %v416, %v416
        %v449 = vmul.f32 %v417, %v417
        %v450 = vmul.f32 %v418, %v418
        %v451 = vmul.f32 %v419, %v419
        %v452 = vmul.f32 %v420, %v420
        %v453 = vmul.f32 %v421, %v421
        %v454 = vmul.f32 %v422, %v422
        %v455 = vmul.f32 %v423, %v423
        %v456 = vmul.f32 %v424, %v424
        %v457 = vmul.f32 %v425, %v425
        %v458 = vmul.f32 %v426, %v426
        %v459 = vmul.f32 %v427, %v427
        %v460 = vmul.f32 %v428, %v428
        %v461 = vmul.f32 %v429, %v429
        %v462 = vmul.f32 %v430, %v430
        %v463 = vmul.f32 %v431, %v431
        %464 = vadd.xlane.f32.xlu0 %v432
        %v465 = vpop.xlane.xlu0 %464
        %466 = vadd.xlane.f32.xlu0 %v433
        %v467 = vpop.xlane.xlu0 %466
        %468 = vadd.xlane.f32.xlu0 %v434
        %v469 = vpop.xlane.xlu0 %468
        %470 = vadd.xlane.f32.xlu0 %v435
        %v471 = vpop.xlane.xlu0 %470
        %472 = vadd.xlane.f32.xlu0 %v436
        %v473 = vpop.xlane.xlu0 %472
        %474 = vadd.xlane.f32.xlu0 %v437
        %v475 = vpop.xlane.xlu0 %474
        %476 = vadd.xlane.f32.xlu0 %v438
        %v477 = vpop.xlane.xlu0 %476
        %478 = vadd.xlane.f32.xlu0 %v439
        %v479 = vpop.xlane.xlu0 %478
        %480 = vadd.xlane.f32.xlu0 %v440
        %v481 = vpop.xlane.xlu0 %480
        %482 = vadd.xlane.f32.xlu0 %v441
        %v483 = vpop.xlane.xlu0 %482
        %484 = vadd.xlane.f32.xlu0 %v442
        %v485 = vpop.xlane.xlu0 %484
        %486 = vadd.xlane.f32.xlu0 %v443
        %v487 = vpop.xlane.xlu0 %486
        %488 = vadd.xlane.f32.xlu0 %v444
        %v489 = vpop.xlane.xlu0 %488
        %490 = vadd.xlane.f32.xlu0 %v445
        %v491 = vpop.xlane.xlu0 %490
        %492 = vadd.xlane.f32.xlu0 %v446
        %v493 = vpop.xlane.xlu0 %492
        %494 = vadd.xlane.f32.xlu0 %v447
        %v495 = vpop.xlane.xlu0 %494
        %496 = vadd.xlane.f32.xlu0 %v448
        %v497 = vpop.xlane.xlu0 %496
        %498 = vadd.xlane.f32.xlu0 %v449
        %v499 = vpop.xlane.xlu0 %498
        %500 = vadd.xlane.f32.xlu0 %v450
        %v501 = vpop.xlane.xlu0 %500
        %502 = vadd.xlane.f32.xlu0 %v451
        %v503 = vpop.xlane.xlu0 %502
        %504 = vadd.xlane.f32.xlu0 %v452
        %v505 = vpop.xlane.xlu0 %504
        %506 = vadd.xlane.f32.xlu0 %v453
        %v507 = vpop.xlane.xlu0 %506
        %508 = vadd.xlane.f32.xlu0 %v454
        %v509 = vpop.xlane.xlu0 %508
        %510 = vadd.xlane.f32.xlu0 %v455
        %v511 = vpop.xlane.xlu0 %510
        %512 = vadd.xlane.f32.xlu0 %v456
        %v513 = vpop.xlane.xlu0 %512
        %514 = vadd.xlane.f32.xlu0 %v457
        %v515 = vpop.xlane.xlu0 %514
        %516 = vadd.xlane.f32.xlu0 %v458
        %v517 = vpop.xlane.xlu0 %516
        %518 = vadd.xlane.f32.xlu0 %v459
        %v519 = vpop.xlane.xlu0 %518
        %520 = vadd.xlane.f32.xlu0 %v460
        %v521 = vpop.xlane.xlu0 %520
        %522 = vadd.xlane.f32.xlu0 %v461
        %v523 = vpop.xlane.xlu0 %522
        %524 = vadd.xlane.f32.xlu0 %v462
        %v525 = vpop.xlane.xlu0 %524
        %526 = vadd.xlane.f32.xlu0 %v463
        %v527 = vpop.xlane.xlu0 %526
        %v528 = vmul.f32 %v465, %v367
        %v529 = vmul.f32 %v467, %v367
        %v530 = vmul.f32 %v469, %v367
        %v531 = vmul.f32 %v471, %v367
        %v532 = vmul.f32 %v473, %v367
        %v533 = vmul.f32 %v475, %v367
        %v534 = vmul.f32 %v477, %v367
        %v535 = vmul.f32 %v479, %v367
        %v536 = vmul.f32 %v481, %v367
        %v537 = vmul.f32 %v483, %v367
        %v538 = vmul.f32 %v485, %v367
        %v539 = vmul.f32 %v487, %v367
        %v540 = vmul.f32 %v489, %v367
        %v541 = vmul.f32 %v491, %v367
        %v542 = vmul.f32 %v493, %v367
        %v543 = vmul.f32 %v495, %v367
        %v544 = vmul.f32 %v497, %v367
        %v545 = vmul.f32 %v499, %v367
        %v546 = vmul.f32 %v501, %v367
        %v547 = vmul.f32 %v503, %v367
        %v548 = vmul.f32 %v505, %v367
        %v549 = vmul.f32 %v507, %v367
        %v550 = vmul.f32 %v509, %v367
        %v551 = vmul.f32 %v511, %v367
        %v552 = vmul.f32 %v513, %v367
        %v553 = vmul.f32 %v515, %v367
        %v554 = vmul.f32 %v517, %v367
        %v555 = vmul.f32 %v519, %v367
        %v556 = vmul.f32 %v521, %v367
        %v557 = vmul.f32 %v523, %v367
        %v558 = vmul.f32 %v525, %v367
        %v559 = vmul.f32 %v527, %v367
        %v560 = vadd.f32 %v528, 1e-05
        %v561 = vadd.f32 %v529, 1e-05
        %v562 = vadd.f32 %v530, 1e-05
        %v563 = vadd.f32 %v531, 1e-05
        %v564 = vadd.f32 %v532, 1e-05
        %v565 = vadd.f32 %v533, 1e-05
        %v566 = vadd.f32 %v534, 1e-05
        %v567 = vadd.f32 %v535, 1e-05
        %v568 = vadd.f32 %v536, 1e-05
        %v569 = vadd.f32 %v537, 1e-05
        %v570 = vadd.f32 %v538, 1e-05
        %v571 = vadd.f32 %v539, 1e-05
        %v572 = vadd.f32 %v540, 1e-05
        %v573 = vadd.f32 %v541, 1e-05
        %v574 = vadd.f32 %v542, 1e-05
        %v575 = vadd.f32 %v543, 1e-05
        %v576 = vadd.f32 %v544, 1e-05
        %v577 = vadd.f32 %v545, 1e-05
        %v578 = vadd.f32 %v546, 1e-05
        %v579 = vadd.f32 %v547, 1e-05
        %v580 = vadd.f32 %v548, 1e-05
        %v581 = vadd.f32 %v549, 1e-05
        %v582 = vadd.f32 %v550, 1e-05
        %v583 = vadd.f32 %v551, 1e-05
        %v584 = vadd.f32 %v552, 1e-05
        %v585 = vadd.f32 %v553, 1e-05
        %v586 = vadd.f32 %v554, 1e-05
        %v587 = vadd.f32 %v555, 1e-05
        %v588 = vadd.f32 %v556, 1e-05
        %v589 = vadd.f32 %v557, 1e-05
        %v590 = vadd.f32 %v558, 1e-05
        %v591 = vadd.f32 %v559, 1e-05
        %v592 = vrsqrt.pop %v560
        %v593 = vmul.f32 %v592, %v560
        %v594 = vmul.f32 %v593, %v592
        %v595 = vmul.f32 0.5, %v594
        %v596 = vsub.f32 1.5, %v595
        %v597 = vmul.f32 %v592, %v596
        %vm598 = vweird.f32 %v560
        %vm599 = vweird.f32 %v592
        %vm600 = vmor %vm598, %vm599
        %v601 = vsel %vm600, %v592, %v597
        %v602 = vrsqrt.pop %v561
        %v603 = vmul.f32 %v602, %v561
        %v604 = vmul.f32 %v603, %v602
        %v605 = vmul.f32 0.5, %v604
        %v606 = vsub.f32 1.5, %v605
        %v607 = vmul.f32 %v602, %v606
        %vm608 = vweird.f32 %v561
        %vm609 = vweird.f32 %v602
        %vm610 = vmor %vm608, %vm609
        %v611 = vsel %vm610, %v602, %v607
        %v612 = vrsqrt.pop %v562
        %v613 = vmul.f32 %v612, %v562
        %v614 = vmul.f32 %v613, %v612
        %v615 = vmul.f32 0.5, %v614
        %v616 = vsub.f32 1.5, %v615
        %v617 = vmul.f32 %v612, %v616
        %vm618 = vweird.f32 %v562
        %vm619 = vweird.f32 %v612
        %vm620 = vmor %vm618, %vm619
        %v621 = vsel %vm620, %v612, %v617
        %v622 = vrsqrt.pop %v563
        %v623 = vmul.f32 %v622, %v563
        %v624 = vmul.f32 %v623, %v622
        %v625 = vmul.f32 0.5, %v624
        %v626 = vsub.f32 1.5, %v625
        %v627 = vmul.f32 %v622, %v626
        %vm628 = vweird.f32 %v563
        %vm629 = vweird.f32 %v622
        %vm630 = vmor %vm628, %vm629
        %v631 = vsel %vm630, %v622, %v627
        %v632 = vrsqrt.pop %v564
        %v633 = vmul.f32 %v632, %v564
        %v634 = vmul.f32 %v633, %v632
        %v635 = vmul.f32 0.5, %v634
        %v636 = vsub.f32 1.5, %v635
        %v637 = vmul.f32 %v632, %v636
        %vm638 = vweird.f32 %v564
        %vm639 = vweird.f32 %v632
        %vm640 = vmor %vm638, %vm639
        %v641 = vsel %vm640, %v632, %v637
        %v642 = vrsqrt.pop %v565
        %v643 = vmul.f32 %v642, %v565
        %v644 = vmul.f32 %v643, %v642
        %v645 = vmul.f32 0.5, %v644
        %v646 = vsub.f32 1.5, %v645
        %v647 = vmul.f32 %v642, %v646
        %vm648 = vweird.f32 %v565
        %vm649 = vweird.f32 %v642
        %vm650 = vmor %vm648, %vm649
        %v651 = vsel %vm650, %v642, %v647
        %v652 = vrsqrt.pop %v566
        %v653 = vmul.f32 %v652, %v566
        %v654 = vmul.f32 %v653, %v652
        %v655 = vmul.f32 0.5, %v654
        %v656 = vsub.f32 1.5, %v655
        %v657 = vmul.f32 %v652, %v656
        %vm658 = vweird.f32 %v566
        %vm659 = vweird.f32 %v652
        %vm660 = vmor %vm658, %vm659
        %v661 = vsel %vm660, %v652, %v657
        %v662 = vrsqrt.pop %v567
        %v663 = vmul.f32 %v662, %v567
        %v664 = vmul.f32 %v663, %v662
        %v665 = vmul.f32 0.5, %v664
        %v666 = vsub.f32 1.5, %v665
        %v667 = vmul.f32 %v662, %v666
        %vm668 = vweird.f32 %v567
        %vm669 = vweird.f32 %v662
        %vm670 = vmor %vm668, %vm669
        %v671 = vsel %vm670, %v662, %v667
        %v672 = vrsqrt.pop %v568
        %v673 = vmul.f32 %v672, %v568
        %v674 = vmul.f32 %v673, %v672
        %v675 = vmul.f32 0.5, %v674
        %v676 = vsub.f32 1.5, %v675
        %v677 = vmul.f32 %v672, %v676
        %vm678 = vweird.f32 %v568
        %vm679 = vweird.f32 %v672
        %vm680 = vmor %vm678, %vm679
        %v681 = vsel %vm680, %v672, %v677
        %v682 = vrsqrt.pop %v569
        %v683 = vmul.f32 %v682, %v569
        %v684 = vmul.f32 %v683, %v682
        %v685 = vmul.f32 0.5, %v684
        %v686 = vsub.f32 1.5, %v685
        %v687 = vmul.f32 %v682, %v686
        %vm688 = vweird.f32 %v569
        %vm689 = vweird.f32 %v682
        %vm690 = vmor %vm688, %vm689
        %v691 = vsel %vm690, %v682, %v687
        %v692 = vrsqrt.pop %v570
        %v693 = vmul.f32 %v692, %v570
        %v694 = vmul.f32 %v693, %v692
        %v695 = vmul.f32 0.5, %v694
        %v696 = vsub.f32 1.5, %v695
        %v697 = vmul.f32 %v692, %v696
        %vm698 = vweird.f32 %v570
        %vm699 = vweird.f32 %v692
        %vm700 = vmor %vm698, %vm699
        %v701 = vsel %vm700, %v692, %v697
        %v702 = vrsqrt.pop %v571
        %v703 = vmul.f32 %v702, %v571
        %v704 = vmul.f32 %v703, %v702
        %v705 = vmul.f32 0.5, %v704
        %v706 = vsub.f32 1.5, %v705
        %v707 = vmul.f32 %v702, %v706
        %vm708 = vweird.f32 %v571
        %vm709 = vweird.f32 %v702
        %vm710 = vmor %vm708, %vm709
        %v711 = vsel %vm710, %v702, %v707
        %v712 = vrsqrt.pop %v572
        %v713 = vmul.f32 %v712, %v572
        %v714 = vmul.f32 %v713, %v712
        %v715 = vmul.f32 0.5, %v714
        %v716 = vsub.f32 1.5, %v715
        %v717 = vmul.f32 %v712, %v716
        %vm718 = vweird.f32 %v572
        %vm719 = vweird.f32 %v712
        %vm720 = vmor %vm718, %vm719
        %v721 = vsel %vm720, %v712, %v717
        %v722 = vrsqrt.pop %v573
        %v723 = vmul.f32 %v722, %v573
        %v724 = vmul.f32 %v723, %v722
        %v725 = vmul.f32 0.5, %v724
        %v726 = vsub.f32 1.5, %v725
        %v727 = vmul.f32 %v722, %v726
        %vm728 = vweird.f32 %v573
        %vm729 = vweird.f32 %v722
        %vm730 = vmor %vm728, %vm729
        %v731 = vsel %vm730, %v722, %v727
        %v732 = vrsqrt.pop %v574
        %v733 = vmul.f32 %v732, %v574
        %v734 = vmul.f32 %v733, %v732
        %v735 = vmul.f32 0.5, %v734
        %v736 = vsub.f32 1.5, %v735
        %v737 = vmul.f32 %v732, %v736
        %vm738 = vweird.f32 %v574
        %vm739 = vweird.f32 %v732
        %vm740 = vmor %vm738, %vm739
        %v741 = vsel %vm740, %v732, %v737
        %v742 = vrsqrt.pop %v575
        %v743 = vmul.f32 %v742, %v575
        %v744 = vmul.f32 %v743, %v742
        %v745 = vmul.f32 0.5, %v744
        %v746 = vsub.f32 1.5, %v745
        %v747 = vmul.f32 %v742, %v746
        %vm748 = vweird.f32 %v575
        %vm749 = vweird.f32 %v742
        %vm750 = vmor %vm748, %vm749
        %v751 = vsel %vm750, %v742, %v747
        %v752 = vrsqrt.pop %v576
        %v753 = vmul.f32 %v752, %v576
        %v754 = vmul.f32 %v753, %v752
        %v755 = vmul.f32 0.5, %v754
        %v756 = vsub.f32 1.5, %v755
        %v757 = vmul.f32 %v752, %v756
        %vm758 = vweird.f32 %v576
        %vm759 = vweird.f32 %v752
        %vm760 = vmor %vm758, %vm759
        %v761 = vsel %vm760, %v752, %v757
        %v762 = vrsqrt.pop %v577
        %v763 = vmul.f32 %v762, %v577
        %v764 = vmul.f32 %v763, %v762
        %v765 = vmul.f32 0.5, %v764
        %v766 = vsub.f32 1.5, %v765
        %v767 = vmul.f32 %v762, %v766
        %vm768 = vweird.f32 %v577
        %vm769 = vweird.f32 %v762
        %vm770 = vmor %vm768, %vm769
        %v771 = vsel %vm770, %v762, %v767
        %v772 = vrsqrt.pop %v578
        %v773 = vmul.f32 %v772, %v578
        %v774 = vmul.f32 %v773, %v772
        %v775 = vmul.f32 0.5, %v774
        %v776 = vsub.f32 1.5, %v775
        %v777 = vmul.f32 %v772, %v776
        %vm778 = vweird.f32 %v578
        %vm779 = vweird.f32 %v772
        %vm780 = vmor %vm778, %vm779
        %v781 = vsel %vm780, %v772, %v777
        %v782 = vrsqrt.pop %v579
        %v783 = vmul.f32 %v782, %v579
        %v784 = vmul.f32 %v783, %v782
        %v785 = vmul.f32 0.5, %v784
        %v786 = vsub.f32 1.5, %v785
        %v787 = vmul.f32 %v782, %v786
        %vm788 = vweird.f32 %v579
        %vm789 = vweird.f32 %v782
        %vm790 = vmor %vm788, %vm789
        %v791 = vsel %vm790, %v782, %v787
        %v792 = vrsqrt.pop %v580
        %v793 = vmul.f32 %v792, %v580
        %v794 = vmul.f32 %v793, %v792
        %v795 = vmul.f32 0.5, %v794
        %v796 = vsub.f32 1.5, %v795
        %v797 = vmul.f32 %v792, %v796
        %vm798 = vweird.f32 %v580
        %vm799 = vweird.f32 %v792
        %vm800 = vmor %vm798, %vm799
        %v801 = vsel %vm800, %v792, %v797
        %v802 = vrsqrt.pop %v581
        %v803 = vmul.f32 %v802, %v581
        %v804 = vmul.f32 %v803, %v802
        %v805 = vmul.f32 0.5, %v804
        %v806 = vsub.f32 1.5, %v805
        %v807 = vmul.f32 %v802, %v806
        %vm808 = vweird.f32 %v581
        %vm809 = vweird.f32 %v802
        %vm810 = vmor %vm808, %vm809
        %v811 = vsel %vm810, %v802, %v807
        %v812 = vrsqrt.pop %v582
        %v813 = vmul.f32 %v812, %v582
        %v814 = vmul.f32 %v813, %v812
        %v815 = vmul.f32 0.5, %v814
        %v816 = vsub.f32 1.5, %v815
        %v817 = vmul.f32 %v812, %v816
        %vm818 = vweird.f32 %v582
        %vm819 = vweird.f32 %v812
        %vm820 = vmor %vm818, %vm819
        %v821 = vsel %vm820, %v812, %v817
        %v822 = vrsqrt.pop %v583
        %v823 = vmul.f32 %v822, %v583
        %v824 = vmul.f32 %v823, %v822
        %v825 = vmul.f32 0.5, %v824
        %v826 = vsub.f32 1.5, %v825
        %v827 = vmul.f32 %v822, %v826
        %vm828 = vweird.f32 %v583
        %vm829 = vweird.f32 %v822
        %vm830 = vmor %vm828, %vm829
        %v831 = vsel %vm830, %v822, %v827
        %v832 = vrsqrt.pop %v584
        %v833 = vmul.f32 %v832, %v584
        %v834 = vmul.f32 %v833, %v832
        %v835 = vmul.f32 0.5, %v834
        %v836 = vsub.f32 1.5, %v835
        %v837 = vmul.f32 %v832, %v836
        %vm838 = vweird.f32 %v584
        %vm839 = vweird.f32 %v832
        %vm840 = vmor %vm838, %vm839
        %v841 = vsel %vm840, %v832, %v837
        %v842 = vrsqrt.pop %v585
        %v843 = vmul.f32 %v842, %v585
        %v844 = vmul.f32 %v843, %v842
        %v845 = vmul.f32 0.5, %v844
        %v846 = vsub.f32 1.5, %v845
        %v847 = vmul.f32 %v842, %v846
        %vm848 = vweird.f32 %v585
        %vm849 = vweird.f32 %v842
        %vm850 = vmor %vm848, %vm849
        %v851 = vsel %vm850, %v842, %v847
        %v852 = vrsqrt.pop %v586
        %v853 = vmul.f32 %v852, %v586
        %v854 = vmul.f32 %v853, %v852
        %v855 = vmul.f32 0.5, %v854
        %v856 = vsub.f32 1.5, %v855
        %v857 = vmul.f32 %v852, %v856
        %vm858 = vweird.f32 %v586
        %vm859 = vweird.f32 %v852
        %vm860 = vmor %vm858, %vm859
        %v861 = vsel %vm860, %v852, %v857
        %v862 = vrsqrt.pop %v587
        %v863 = vmul.f32 %v862, %v587
        %v864 = vmul.f32 %v863, %v862
        %v865 = vmul.f32 0.5, %v864
        %v866 = vsub.f32 1.5, %v865
        %v867 = vmul.f32 %v862, %v866
        %vm868 = vweird.f32 %v587
        %vm869 = vweird.f32 %v862
        %vm870 = vmor %vm868, %vm869
        %v871 = vsel %vm870, %v862, %v867
        %v872 = vrsqrt.pop %v588
        %v873 = vmul.f32 %v872, %v588
        %v874 = vmul.f32 %v873, %v872
        %v875 = vmul.f32 0.5, %v874
        %v876 = vsub.f32 1.5, %v875
        %v877 = vmul.f32 %v872, %v876
        %vm878 = vweird.f32 %v588
        %vm879 = vweird.f32 %v872
        %vm880 = vmor %vm878, %vm879
        %v881 = vsel %vm880, %v872, %v877
        %v882 = vrsqrt.pop %v589
        %v883 = vmul.f32 %v882, %v589
        %v884 = vmul.f32 %v883, %v882
        %v885 = vmul.f32 0.5, %v884
        %v886 = vsub.f32 1.5, %v885
        %v887 = vmul.f32 %v882, %v886
        %vm888 = vweird.f32 %v589
        %vm889 = vweird.f32 %v882
        %vm890 = vmor %vm888, %vm889
        %v891 = vsel %vm890, %v882, %v887
        %v892 = vrsqrt.pop %v590
        %v893 = vmul.f32 %v892, %v590
        %v894 = vmul.f32 %v893, %v892
        %v895 = vmul.f32 0.5, %v894
        %v896 = vsub.f32 1.5, %v895
        %v897 = vmul.f32 %v892, %v896
        %vm898 = vweird.f32 %v590
        %vm899 = vweird.f32 %v892
        %vm900 = vmor %vm898, %vm899
        %v901 = vsel %vm900, %v892, %v897
        %v902 = vrsqrt.pop %v591
        %v903 = vmul.f32 %v902, %v591
        %v904 = vmul.f32 %v903, %v902
        %v905 = vmul.f32 0.5, %v904
        %v906 = vsub.f32 1.5, %v905
        %v907 = vmul.f32 %v902, %v906
        %vm908 = vweird.f32 %v591
        %vm909 = vweird.f32 %v902
        %vm910 = vmor %vm908, %vm909
        %v911 = vsel %vm910, %v902, %v907
        %v912 = vmul.f32 %v400, %v601
        %v913 = vmul.f32 %v401, %v611
        %v914 = vmul.f32 %v402, %v621
        %v915 = vmul.f32 %v403, %v631
        %v916 = vmul.f32 %v404, %v641
        %v917 = vmul.f32 %v405, %v651
        %v918 = vmul.f32 %v406, %v661
        %v919 = vmul.f32 %v407, %v671
        %v920 = vmul.f32 %v408, %v681
        %v921 = vmul.f32 %v409, %v691
        %v922 = vmul.f32 %v410, %v701
        %v923 = vmul.f32 %v411, %v711
        %v924 = vmul.f32 %v412, %v721
        %v925 = vmul.f32 %v413, %v731
        %v926 = vmul.f32 %v414, %v741
        %v927 = vmul.f32 %v415, %v751
        %v928 = vmul.f32 %v416, %v761
        %v929 = vmul.f32 %v417, %v771
        %v930 = vmul.f32 %v418, %v781
        %v931 = vmul.f32 %v419, %v791
        %v932 = vmul.f32 %v420, %v801
        %v933 = vmul.f32 %v421, %v811
        %v934 = vmul.f32 %v422, %v821
        %v935 = vmul.f32 %v423, %v831
        %v936 = vmul.f32 %v424, %v841
        %v937 = vmul.f32 %v425, %v851
        %v938 = vmul.f32 %v426, %v861
        %v939 = vmul.f32 %v427, %v871
        %v940 = vmul.f32 %v428, %v881
        %v941 = vmul.f32 %v429, %v891
        %v942 = vmul.f32 %v430, %v901
        %v943 = vmul.f32 %v431, %v911
        %v945 = vperm.slane %v295, 0
        %v947 = vmul.f32 %v912, %v945
        %v948 = vmul.f32 %v913, %v945
        %v949 = vmul.f32 %v914, %v945
        %v950 = vmul.f32 %v915, %v945
        %v951 = vmul.f32 %v916, %v945
        %v952 = vmul.f32 %v917, %v945
        %v953 = vmul.f32 %v918, %v945
        %v954 = vmul.f32 %v919, %v945
        %v955 = vmul.f32 %v920, %v945
        %v956 = vmul.f32 %v921, %v945
        %v957 = vmul.f32 %v922, %v945
        %v958 = vmul.f32 %v923, %v945
        %v959 = vmul.f32 %v924, %v945
        %v960 = vmul.f32 %v925, %v945
        %v961 = vmul.f32 %v926, %v945
        %v962 = vmul.f32 %v927, %v945
        %v963 = vmul.f32 %v928, %v945
        %v964 = vmul.f32 %v929, %v945
        %v965 = vmul.f32 %v930, %v945
        %v966 = vmul.f32 %v931, %v945
        %v967 = vmul.f32 %v932, %v945
        %v968 = vmul.f32 %v933, %v945
        %v969 = vmul.f32 %v934, %v945
        %v970 = vmul.f32 %v935, %v945
        %v971 = vmul.f32 %v936, %v945
        %v972 = vmul.f32 %v937, %v945
        %v973 = vmul.f32 %v938, %v945
        %v974 = vmul.f32 %v939, %v945
        %v975 = vmul.f32 %v940, %v945
        %v976 = vmul.f32 %v941, %v945
        %v977 = vmul.f32 %v942, %v945
        %v978 = vmul.f32 %v943, %v945
        %v980 = vperm.slane %v296, 0
        %v982 = vadd.f32 %v947, %v980
        %v983 = vadd.f32 %v948, %v980
        %v984 = vadd.f32 %v949, %v980
        %v985 = vadd.f32 %v950, %v980
        %v986 = vadd.f32 %v951, %v980
        %v987 = vadd.f32 %v952, %v980
        %v988 = vadd.f32 %v953, %v980
        %v989 = vadd.f32 %v954, %v980
        %v990 = vadd.f32 %v955, %v980
        %v991 = vadd.f32 %v956, %v980
        %v992 = vadd.f32 %v957, %v980
        %v993 = vadd.f32 %v958, %v980
        %v994 = vadd.f32 %v959, %v980
        %v995 = vadd.f32 %v960, %v980
        %v996 = vadd.f32 %v961, %v980
        %v997 = vadd.f32 %v962, %v980
        %v998 = vadd.f32 %v963, %v980
        %v999 = vadd.f32 %v964, %v980
        %v1000 = vadd.f32 %v965, %v980
        %v1001 = vadd.f32 %v966, %v980
        %v1002 = vadd.f32 %v967, %v980
        %v1003 = vadd.f32 %v968, %v980
        %v1004 = vadd.f32 %v969, %v980
        %v1005 = vadd.f32 %v970, %v980
        %v1006 = vadd.f32 %v971, %v980
        %v1007 = vadd.f32 %v972, %v980
        %v1008 = vadd.f32 %v973, %v980
        %v1009 = vadd.f32 %v974, %v980
        %v1010 = vadd.f32 %v975, %v980
        %v1011 = vadd.f32 %v976, %v980
        %v1012 = vadd.f32 %v977, %v980
        %v1013 = vadd.f32 %v978, %v980
        %v1014 = vld [vmem:[%s260] sm:$0xff]
        %v1015 = vld [vmem:[%s260 + $0x8] sm:$0xff]
        %v1016 = vld [vmem:[%s260 + $0x10] sm:$0xff]
        %v1017 = vld [vmem:[%s260 + $0x18] sm:$0xff]
        %v1018 = vld [vmem:[%s260 + $0x20] sm:$0xff]
        %v1019 = vld [vmem:[%s260 + $0x28] sm:$0xff]
        %v1020 = vld [vmem:[%s260 + $0x30] sm:$0xff]
        %v1021 = vld [vmem:[%s260 + $0x38] sm:$0xff]
        %v1022 = vld [vmem:[%s260 + $0x40] sm:$0xff]
        %v1023 = vld [vmem:[%s260 + $0x48] sm:$0xff]
        %v1024 = vld [vmem:[%s260 + $0x50] sm:$0xff]
        %v1025 = vld [vmem:[%s260 + $0x58] sm:$0xff]
        %v1026 = vld [vmem:[%s260 + $0x60] sm:$0xff]
        %v1027 = vld [vmem:[%s260 + $0x68] sm:$0xff]
        %v1028 = vld [vmem:[%s260 + $0x70] sm:$0xff]
        %v1029 = vld [vmem:[%s260 + $0x78] sm:$0xff]
        %v1030 = vld [vmem:[%s260 + $0x80] sm:$0xff]
        %v1031 = vld [vmem:[%s260 + $0x88] sm:$0xff]
        %v1032 = vld [vmem:[%s260 + $0x90] sm:$0xff]
        %v1033 = vld [vmem:[%s260 + $0x98] sm:$0xff]
        %v1034 = vld [vmem:[%s260 + $0xa0] sm:$0xff]
        %v1035 = vld [vmem:[%s260 + $0xa8] sm:$0xff]
        %v1036 = vld [vmem:[%s260 + $0xb0] sm:$0xff]
        %v1037 = vld [vmem:[%s260 + $0xb8] sm:$0xff]
        %v1038 = vld [vmem:[%s260 + $0xc0] sm:$0xff]
        %v1039 = vld [vmem:[%s260 + $0xc8] sm:$0xff]
        %v1040 = vld [vmem:[%s260 + $0xd0] sm:$0xff]
        %v1041 = vld [vmem:[%s260 + $0xd8] sm:$0xff]
        %v1042 = vld [vmem:[%s260 + $0xe0] sm:$0xff]
        %v1043 = vld [vmem:[%s260 + $0xe8] sm:$0xff]
        %v1044 = vld [vmem:[%s260 + $0xf0] sm:$0xff]
        %v1045 = vld [vmem:[%s260 + $0xf8] sm:$0xff]
        %1047 = vset.pattern.permute.xlu0 0
        %1048 = vperm.xlu0 %1047, %v1014
        %v1049 = vpop.permute.xlu0 %1048
        %1052 = vset.pattern.permute.xlu0 0
        %1053 = vperm.xlu0 %1052, %v1015
        %v1054 = vpop.permute.xlu0 %1053
        %1057 = vset.pattern.permute.xlu0 0
        %1058 = vperm.xlu0 %1057, %v1016
        %v1059 = vpop.permute.xlu0 %1058
        %1062 = vset.pattern.permute.xlu0 0
        %1063 = vperm.xlu0 %1062, %v1017
        %v1064 = vpop.permute.xlu0 %1063
        %1067 = vset.pattern.permute.xlu0 0
        %1068 = vperm.xlu0 %1067, %v1018
        %v1069 = vpop.permute.xlu0 %1068
        %1072 = vset.pattern.permute.xlu0 0
        %1073 = vperm.xlu0 %1072, %v1019
        %v1074 = vpop.permute.xlu0 %1073
        %1077 = vset.pattern.permute.xlu0 0
        %1078 = vperm.xlu0 %1077, %v1020
        %v1079 = vpop.permute.xlu0 %1078
        %1082 = vset.pattern.permute.xlu0 0
        %1083 = vperm.xlu0 %1082, %v1021
        %v1084 = vpop.permute.xlu0 %1083
        %1087 = vset.pattern.permute.xlu0 0
        %1088 = vperm.xlu0 %1087, %v1022
        %v1089 = vpop.permute.xlu0 %1088
        %1092 = vset.pattern.permute.xlu0 0
        %1093 = vperm.xlu0 %1092, %v1023
        %v1094 = vpop.permute.xlu0 %1093
        %1097 = vset.pattern.permute.xlu0 0
        %1098 = vperm.xlu0 %1097, %v1024
        %v1099 = vpop.permute.xlu0 %1098
        %1102 = vset.pattern.permute.xlu0 0
        %1103 = vperm.xlu0 %1102, %v1025
        %v1104 = vpop.permute.xlu0 %1103
        %1107 = vset.pattern.permute.xlu0 0
        %1108 = vperm.xlu0 %1107, %v1026
        %v1109 = vpop.permute.xlu0 %1108
        %1112 = vset.pattern.permute.xlu0 0
        %1113 = vperm.xlu0 %1112, %v1027
        %v1114 = vpop.permute.xlu0 %1113
        %1117 = vset.pattern.permute.xlu0 0
        %1118 = vperm.xlu0 %1117, %v1028
        %v1119 = vpop.permute.xlu0 %1118
        %1122 = vset.pattern.permute.xlu0 0
        %1123 = vperm.xlu0 %1122, %v1029
        %v1124 = vpop.permute.xlu0 %1123
        %1127 = vset.pattern.permute.xlu0 0
        %1128 = vperm.xlu0 %1127, %v1030
        %v1129 = vpop.permute.xlu0 %1128
        %1132 = vset.pattern.permute.xlu0 0
        %1133 = vperm.xlu0 %1132, %v1031
        %v1134 = vpop.permute.xlu0 %1133
        %1137 = vset.pattern.permute.xlu0 0
        %1138 = vperm.xlu0 %1137, %v1032
        %v1139 = vpop.permute.xlu0 %1138
        %1142 = vset.pattern.permute.xlu0 0
        %1143 = vperm.xlu0 %1142, %v1033
        %v1144 = vpop.permute.xlu0 %1143
        %1147 = vset.pattern.permute.xlu0 0
        %1148 = vperm.xlu0 %1147, %v1034
        %v1149 = vpop.permute.xlu0 %1148
        %1152 = vset.pattern.permute.xlu0 0
        %1153 = vperm.xlu0 %1152, %v1035
        %v1154 = vpop.permute.xlu0 %1153
        %1157 = vset.pattern.permute.xlu0 0
        %1158 = vperm.xlu0 %1157, %v1036
        %v1159 = vpop.permute.xlu0 %1158
        %1162 = vset.pattern.permute.xlu0 0
        %1163 = vperm.xlu0 %1162, %v1037
        %v1164 = vpop.permute.xlu0 %1163
        %1167 = vset.pattern.permute.xlu0 0
        %1168 = vperm.xlu0 %1167, %v1038
        %v1169 = vpop.permute.xlu0 %1168
        %1172 = vset.pattern.permute.xlu0 0
        %1173 = vperm.xlu0 %1172, %v1039
        %v1174 = vpop.permute.xlu0 %1173
        %1177 = vset.pattern.permute.xlu0 0
        %1178 = vperm.xlu0 %1177, %v1040
        %v1179 = vpop.permute.xlu0 %1178
        %1182 = vset.pattern.permute.xlu0 0
        %1183 = vperm.xlu0 %1182, %v1041
        %v1184 = vpop.permute.xlu0 %1183
        %1187 = vset.pattern.permute.xlu0 0
        %1188 = vperm.xlu0 %1187, %v1042
        %v1189 = vpop.permute.xlu0 %1188
        %1192 = vset.pattern.permute.xlu0 0
        %1193 = vperm.xlu0 %1192, %v1043
        %v1194 = vpop.permute.xlu0 %1193
        %1197 = vset.pattern.permute.xlu0 0
        %1198 = vperm.xlu0 %1197, %v1044
        %v1199 = vpop.permute.xlu0 %1198
        %1202 = vset.pattern.permute.xlu0 0
        %1203 = vperm.xlu0 %1202, %v1045
        %v1204 = vpop.permute.xlu0 %1203
        %v1206 = vmul.f32 %v982, %v1049
        %v1207 = vmul.f32 %v983, %v1054
        %v1208 = vmul.f32 %v984, %v1059
        %v1209 = vmul.f32 %v985, %v1064
        %v1210 = vmul.f32 %v986, %v1069
        %v1211 = vmul.f32 %v987, %v1074
        %v1212 = vmul.f32 %v988, %v1079
        %v1213 = vmul.f32 %v989, %v1084
        %v1214 = vmul.f32 %v990, %v1089
        %v1215 = vmul.f32 %v991, %v1094
        %v1216 = vmul.f32 %v992, %v1099
        %v1217 = vmul.f32 %v993, %v1104
        %v1218 = vmul.f32 %v994, %v1109
        %v1219 = vmul.f32 %v995, %v1114
        %v1220 = vmul.f32 %v996, %v1119
        %v1221 = vmul.f32 %v997, %v1124
        %v1222 = vmul.f32 %v998, %v1129
        %v1223 = vmul.f32 %v999, %v1134
        %v1224 = vmul.f32 %v1000, %v1139
        %v1225 = vmul.f32 %v1001, %v1144
        %v1226 = vmul.f32 %v1002, %v1149
        %v1227 = vmul.f32 %v1003, %v1154
        %v1228 = vmul.f32 %v1004, %v1159
        %v1229 = vmul.f32 %v1005, %v1164
        %v1230 = vmul.f32 %v1006, %v1169
        %v1231 = vmul.f32 %v1007, %v1174
        %v1232 = vmul.f32 %v1008, %v1179
        %v1233 = vmul.f32 %v1009, %v1184
        %v1234 = vmul.f32 %v1010, %v1189
        %v1235 = vmul.f32 %v1011, %v1194
        %v1236 = vmul.f32 %v1012, %v1199
        %v1237 = vmul.f32 %v1013, %v1204
        %1238 = vst [vmem:[%s241] sm:$0xff] %v1206
        %1239 = vst [vmem:[%s241 + $0x8] sm:$0xff] %v1207
        %1240 = vst [vmem:[%s241 + $0x10] sm:$0xff] %v1208
        %1241 = vst [vmem:[%s241 + $0x18] sm:$0xff] %v1209
        %1242 = vst [vmem:[%s241 + $0x20] sm:$0xff] %v1210
        %1243 = vst [vmem:[%s241 + $0x28] sm:$0xff] %v1211
        %1244 = vst [vmem:[%s241 + $0x30] sm:$0xff] %v1212
        %1245 = vst [vmem:[%s241 + $0x38] sm:$0xff] %v1213
        %1246 = vst [vmem:[%s241 + $0x40] sm:$0xff] %v1214
        %1247 = vst [vmem:[%s241 + $0x48] sm:$0xff] %v1215
        %1248 = vst [vmem:[%s241 + $0x50] sm:$0xff] %v1216
        %1249 = vst [vmem:[%s241 + $0x58] sm:$0xff] %v1217
        %1250 = vst [vmem:[%s241 + $0x60] sm:$0xff] %v1218
        %1251 = vst [vmem:[%s241 + $0x68] sm:$0xff] %v1219
        %1252 = vst [vmem:[%s241 + $0x70] sm:$0xff] %v1220
        %1253 = vst [vmem:[%s241 + $0x78] sm:$0xff] %v1221
        %1254 = vst [vmem:[%s241 + $0x80] sm:$0xff] %v1222
        %1255 = vst [vmem:[%s241 + $0x88] sm:$0xff] %v1223
        %1256 = vst [vmem:[%s241 + $0x90] sm:$0xff] %v1224
        %1257 = vst [vmem:[%s241 + $0x98] sm:$0xff] %v1225
        %1258 = vst [vmem:[%s241 + $0xa0] sm:$0xff] %v1226
        %1259 = vst [vmem:[%s241 + $0xa8] sm:$0xff] %v1227
        %1260 = vst [vmem:[%s241 + $0xb0] sm:$0xff] %v1228
        %1261 = vst [vmem:[%s241 + $0xb8] sm:$0xff] %v1229
        %1262 = vst [vmem:[%s241 + $0xc0] sm:$0xff] %v1230
        %1263 = vst [vmem:[%s241 + $0xc8] sm:$0xff] %v1231
        %1264 = vst [vmem:[%s241 + $0xd0] sm:$0xff] %v1232
        %1265 = vst [vmem:[%s241 + $0xd8] sm:$0xff] %v1233
        %1266 = vst [vmem:[%s241 + $0xe0] sm:$0xff] %v1234
        %1267 = vst [vmem:[%s241 + $0xe8] sm:$0xff] %v1235
        %1268 = vst [vmem:[%s241 + $0xf0] sm:$0xff] %v1236
        %1269 = vst [vmem:[%s241 + $0xf8] sm:$0xff] %v1237
        %s1270 = sand.u32 %s138, 1
        %s1271 = scalar_lea.sflag [#allocation3], %s1270
        %s1272 = sand.u32 %s138, 1
        %s1273 = smul.addr %s1272, 256
        %s1274 = scalar_lea.vmem [#allocation2], %s1273
        // Predicated region
        $region37: #{tpu_custom_call.1} parent=35 // pred_check
          %p1275 = pneg %p148
        $region38: #{tpu_custom_call.1} parent=35 // pred_check_branch
          %1277 = sbr.rel (%p1275) target = $region40
        $region39: #{tpu_custom_call.1} parent=35 // pred_region
          %s1278 = smul.u32 32, %s23
          %1280 = vsyncadd %s1271, 0
          %s1281 = smul.addr %s22, 32
          %s1282 = sadd.s32 %s1278, %s1281
          %s1283 = smul.addr %s1282, 8
          %s1284 = scalar_lea.hbm %s4, %s1283
          %s1285 = sshll.u32 %s1274, 4
          %s1286 = int_to_ptr.vmem [resolvable:$true] %s1285
          %s1287 = sshll.u32 %s1284, 4
          %s1288 = int_to_ptr.hbm [resolvable:$true] %s1287
          %1293 = dma.vmem_to_hbm [thread:$0]  %s1286, 4096, %s1288, %s1271, 128, 128, 8
        $region40: #{tpu_custom_call.1} parent=35 // pred_fallthru
          _
      $region36: #{tpu_custom_call.1} parent=5 // pred_fallthru
        _
      %p1294 = scmp.le.s32.totalorder 2, %s13
      // Predicated region
      $region41: #{tpu_custom_call.1} parent=5 // pred_check
        %p1295 = pneg %p1294
      $region42: #{tpu_custom_call.1} parent=5 // pred_check_branch
        %1297 = sbr.rel (%p1295) target = $region44
      $region43: #{tpu_custom_call.1} parent=5 // pred_region
        %s1298 = ssub.s32 %s13, 2
        // Predicated region
        $region45: #{tpu_custom_call.1} parent=43 // pred_check
          %p1299 = pneg %p154
        $region46: #{tpu_custom_call.1} parent=43 // pred_check_branch
          %1301 = sbr.rel (%p1299) target = $region48
        $region47: #{tpu_custom_call.1} parent=43 // pred_region
          %s1302 = sand.u32 %s139, 1
          %s1303 = scalar_lea.sflag [#allocation3], %s1302
          %s1304 = sand.u32 %s139, 1
          %s1305 = smul.addr %s1304, 256
          %s1306 = scalar_lea.vmem [#allocation2], %s1305
          %1308 = dma.done %s1303, 4096
        $region48: #{tpu_custom_call.1} parent=43 // pred_fallthru
          _
      $region44: #{tpu_custom_call.1} parent=5 // pred_fallthru
        _
    $region6: #{tpu_custom_call.1} parent=1 // loop_footer
      %s17 = sadd.s32 1, %s13
    $region7: #{tpu_custom_call.1} parent=1 // loop_footer_branch
      %12 = sbr.rel target = $region3
    $region8: #{tpu_custom_call.1} parent=1 // loop_exit
      _
    %1309 = vsyncpa [#allocation3], 1
    %s1310 = scalar_lea.sflag [#allocation3], 1
    %1311 = vsyncpa %s1310, 1

</llo_original>
